<compile_context>
chip_gen: v7x
topology: tpu7x:2x2x1
jax: 0.10.0
libtpu: 0.0.40
codegen_flags: <defaults>
</compile_context>

<pallas_src>
import jax
import jax.numpy as jnp
from jax.experimental import pallas as pl
from jax.experimental.pallas import tpu as pltpu

LEAKY_SLOPE = 0.01  # PyTorch F.leaky_relu default negative_slope


def _ceil_to(x, m):
    return ((x + m - 1) // m) * m


def _epilogue(y_f32):
    # leaky_relu(y) = max(y, 0.01*y) for slope in (0,1): one vmul + one vmax.
    act = jnp.maximum(y_f32, LEAKY_SLOPE * y_f32)
    # sigmoid(a) = 0.5*tanh(0.5*a) + 0.5: one EUP tanh + one FMA, stable.
    return 0.5 * jnp.tanh(0.5 * act) + 0.5


def _linear_act_kernel_noacc(x_ref, wt_ref, o_ref):
    # Single-K-block fast path: no accumulator scratch, no zero fill.
    # x_ref: (tm, K), wt_ref: (K, tn) pre-transposed weight, o_ref: (tm, tn).
    y = jnp.dot(x_ref[...], wt_ref[...], preferred_element_type=jnp.float32)
    o_ref[...] = _epilogue(y).astype(o_ref.dtype)


def _linear_act_kernel_acc(x_ref, wt_ref, o_ref, acc_ref):
    # General path: K-last reduction grid with f32 VMEM accumulator.
    k = pl.program_id(2)

    @pl.when(k == 0)
    def _():
        acc_ref[...] = jnp.zeros_like(acc_ref)

    acc_ref[...] += jnp.dot(x_ref[...], wt_ref[...],
                            preferred_element_type=jnp.float32)

    @pl.when(k == pl.num_programs(2) - 1)
    def _():
        o_ref[...] = _epilogue(acc_ref[...]).astype(o_ref.dtype)


def linear_model_forward(x, w, *, compute_dtype=jnp.bfloat16,
                         tm_max=512, tn_max=512, tk_max=None,
                         vmem_budget=40 * 1024 * 1024):
    """x: (B, IN); w: (OUT, IN) in nn.Linear.weight layout.

    Returns sigmoid(leaky_relu(x @ w.T)) in x's original dtype.
    """
    B, IN = x.shape
    OUT, IN_w = w.shape
    assert IN == IN_w, (IN, IN_w)
    out_dtype = x.dtype

    if compute_dtype is not None:  # bf16 MXU feed by default; f32 accumulation.
        x = x.astype(compute_dtype)
        w = w.astype(compute_dtype)
    in_bytes = jnp.dtype(x.dtype).itemsize
    out_bytes = jnp.dtype(out_dtype).itemsize
    if tk_max is None:
        tk_max = 2048 if in_bytes <= 2 else 1024

    # ---- N (output features): lane-dense (multiple of 128) output slab ----
    n_dense = _ceil_to(OUT, 128)
    btn = n_dense if n_dense <= tn_max else tn_max

    # ---- K (input features): avoid runtime padding of x where possible ----
    if IN <= tk_max:
        btk = IN                      # full-extent K block -> grid_K == 1
    elif IN % tk_max == 0:
        btk = tk_max
    else:
        btk = 0
        for cand in range(tk_max - (tk_max % 128), 127, -128):
            if IN % cand == 0:        # 128-multiple divisor of IN: no x pad
                btk = cand
                break
        if btk == 0:
            # TODO(synk): mask the last K block in-kernel instead of padding x.
            btk = tk_max

    # ---- M (batch) ----
    btm = B if B <= tm_max else tm_max

    # v7x has 2 TensorCores: if a large problem collapsed to one (M, N) block,
    # split the batch tile so the "parallel" axes expose >= 2 blocks.
    if B <= btm and n_dense <= btn and btm >= 256 and btm % 16 == 0:
        btm //= 2

    # ---- VMEM working-set check (v7x: 64 MiB physical; v5e/v6e: 128 MiB) ----
    def _usage(tm, tn, tk):
        return (2 * (tm * tk + tk * tn) * in_bytes    # double-buffered x / w tiles
                + 2 * tm * tn * out_bytes             # double-buffered output tile
                + tm * tn * 4)                        # f32 accumulator scratch

    while _usage(btm, btn, btk) > vmem_budget and btk > 512 and btk % 1024 == 0:
        btk //= 2
    while _usage(btm, btn, btk) > vmem_budget and btn > 128 and btn % 256 == 0:
        btn //= 2
    while _usage(btm, btn, btk) > vmem_budget and btm > 128 and btm % 256 == 0:
        btm //= 2

    Bp = _ceil_to(B, btm)
    Kp = _ceil_to(IN, btk)
    Np = _ceil_to(n_dense, btn)

    # Pad x only when unavoidable (adds HBM traffic on the hot path).
    if (Bp, Kp) != (B, IN):
        x = jnp.pad(x, ((0, Bp - B), (0, Kp - IN)))

    # Weight: transpose once to (IN, OUT) + pad; static under jit, so it folds.
    wt = jnp.transpose(w)
    if (Kp, Np) != (IN, OUT):
        wt = jnp.pad(wt, ((0, Kp - IN), (0, Np - OUT)))

    grid_m, grid_n, grid_k = Bp // btm, Np // btn, Kp // btk
    est_bytes = _usage(btm, btn, btk)
    vmem_limit = int(min(max(2 * est_bytes, 32 * 1024 * 1024),
                         48 * 1024 * 1024))

    if grid_k == 1:
        out = pl.pallas_call(
            _linear_act_kernel_noacc,
            out_shape=jax.ShapeDtypeStruct((Bp, Np), out_dtype),
            grid_spec=pltpu.PrefetchScalarGridSpec(
                num_scalar_prefetch=0,
                grid=(grid_m, grid_n),
                in_specs=[
                    pl.BlockSpec((btm, btk), lambda i, j: (i, 0)),  # x tile
                    pl.BlockSpec((btk, btn), lambda i, j: (0, j)),  # W^T tile
                ],
                out_specs=pl.BlockSpec((btm, btn), lambda i, j: (i, j)),
            ),
            compiler_params=pltpu.CompilerParams(
                dimension_semantics=("parallel", "parallel"),
                vmem_limit_bytes=vmem_limit,
            ),
        )(x, wt)
    else:
        out = pl.pallas_call(
            _linear_act_kernel_acc,
            out_shape=jax.ShapeDtypeStruct((Bp, Np), out_dtype),
            grid_spec=pltpu.PrefetchScalarGridSpec(
                num_scalar_prefetch=0,
                grid=(grid_m, grid_n, grid_k),
                in_specs=[
                    pl.BlockSpec((btm, btk), lambda i, j, k: (i, k)),  # x tile
                    pl.BlockSpec((btk, btn), lambda i, j, k: (k, j)),  # W^T tile
                ],
                out_specs=pl.BlockSpec((btm, btn), lambda i, j, k: (i, j)),
                scratch_shapes=[pltpu.VMEM((btm, btn), jnp.float32)],
            ),
            compiler_params=pltpu.CompilerParams(
                dimension_semantics=("parallel", "parallel", "arbitrary"),
                vmem_limit_bytes=vmem_limit,
            ),
        )(x, wt)

    if (Bp, Np) != (B, OUT):
        # Padded rows/cols contain sigmoid(0)=0.5; slice them away.
        out = out[:B, :OUT]
    return out


def reference_forward(x, w):
    y = x @ w.T
    y = jnp.where(y >= 0, y, LEAKY_SLOPE * y)
    return jax.nn.sigmoid(y)


if __name__ == "__main__":
    # cfg = {'input': 32, 'output': 16, 'activation': 'leaky_relu'}
    B, IN, OUT = 8, 32, 16

    key = jax.random.PRNGKey(0)
    kx, kw = jax.random.split(key)
    x = jax.random.normal(kx, (B, IN), dtype=jnp.float32)
    # Deterministic init mimicking nn.Linear kaiming-uniform bound 1/sqrt(IN)
    bound = 1.0 / (IN ** 0.5)
    w = jax.random.uniform(kw, (OUT, IN), dtype=jnp.float32,
                           minval=-bound, maxval=bound)

    ref = reference_forward(x, w)

    # Default path: bf16 MXU feed, f32 accumulation.
    out_bf16 = jax.block_until_ready(linear_model_forward(x, w))
    assert out_bf16.shape == (B, OUT), out_bf16.shape
    assert out_bf16.dtype == x.dtype, out_bf16.dtype
    assert jnp.allclose(out_bf16, ref, atol=2e-2, rtol=2e-2), (
        "bf16 path mismatch vs reference, max abs diff = "
        f"{float(jnp.max(jnp.abs(out_bf16 - ref)))}")

    # f32 parity path (compute_dtype=None) for tight numerical agreement.
    out_f32 = jax.block_until_ready(
        linear_model_forward(x, w, compute_dtype=None))
    assert jnp.allclose(out_f32, ref, atol=1e-4, rtol=1e-4), (
        "f32 path mismatch vs reference, max abs diff = "
        f"{float(jnp.max(jnp.abs(out_f32 - ref)))}")

    print("KERNEL_OK")
</pallas_src>

<mosaic_0001>
module attributes {stable_mosaic.version = 11 : i64} {
  func.func @_linear_act_kernel_noacc(%arg0: i32, %arg1: i32, %arg2: memref<8x32xbf16, #tpu.memory_space<vmem>>, %arg3: memref<32x128xbf16, #tpu.memory_space<vmem>>, %arg4: memref<8x128xf32, #tpu.memory_space<vmem>>) attributes {dimension_semantics = [#tpu.dimension_semantics<parallel>, #tpu.dimension_semantics<parallel>], iteration_bounds = array<i64: 1, 1>, scalar_prefetch = 0 : i64, scratch_operands = 0 : i64, tpu.core_type = #tpu.core_type<tc>, window_params = [{transform_indices = @transform_0, window_bounds = array<i64: 8, 32>}, {transform_indices = @transform_1, window_bounds = array<i64: 32, 128>}, {transform_indices = @transform_2, window_bounds = array<i64: 8, 128>}]} {
    %c0 = arith.constant 0 : index
    %c0_0 = arith.constant 0 : index
    %0 = vector.load %arg2[%c0, %c0_0] : memref<8x32xbf16, #tpu.memory_space<vmem>>, vector<8x32xbf16>
    %c0_1 = arith.constant 0 : index
    %c0_2 = arith.constant 0 : index
    %1 = vector.load %arg3[%c0_1, %c0_2] : memref<32x128xbf16, #tpu.memory_space<vmem>>, vector<32x128xbf16>
    %cst = arith.constant dense<0.000000e+00> : vector<8x128xf32>
    %2 = tpu.matmul %0, %1, %cst {dimension_numbers = #tpu.dot_dimension_numbers<[1], [0], [0], [1], [0, 0, 1, 1], [], []>} : vector<8x32xbf16>, vector<32x128xbf16>, vector<8x128xf32> -> vector<8x128xf32>
    %cst_3 = arith.constant 0.00999999977 : f32
    %3 = vector.broadcast %cst_3 : f32 to vector<8x128xf32>
    %4 = arith.mulf %3, %2 : vector<8x128xf32>
    %5 = arith.maximumf %2, %4 : vector<8x128xf32>
    %cst_4 = arith.constant 5.000000e-01 : f32
    %6 = vector.broadcast %cst_4 : f32 to vector<8x128xf32>
    %7 = arith.mulf %6, %5 : vector<8x128xf32>
    %8 = math.tanh %7 : vector<8x128xf32>
    %cst_5 = arith.constant 5.000000e-01 : f32
    %9 = vector.broadcast %cst_5 : f32 to vector<8x128xf32>
    %10 = arith.mulf %9, %8 : vector<8x128xf32>
    %cst_6 = arith.constant 5.000000e-01 : f32
    %11 = vector.broadcast %cst_6 : f32 to vector<8x128xf32>
    %12 = arith.addf %10, %11 : vector<8x128xf32>
    %c0_7 = arith.constant 0 : index
    %c0_8 = arith.constant 0 : index
    %13 = vector.load %arg4[%c0_7, %c0_8] : memref<8x128xf32, #tpu.memory_space<vmem>>, vector<8x128xf32>
    tpu.vector_store %arg4[%c0_7, %c0_8], %12 {strides = array<i32>} : memref<8x128xf32, #tpu.memory_space<vmem>>, vector<8x128xf32>,
    return
  }
  func.func @transform_0(%arg0: i32, %arg1: i32) -> (i32, i32) {
    %c0_i32 = arith.constant 0 : i32
    %c0_i32_0 = arith.constant 0 : i32
    return %arg0, %c0_i32 : i32, i32
  }
  func.func @transform_1(%arg0: i32, %arg1: i32) -> (i32, i32) {
    %c0_i32 = arith.constant 0 : i32
    %c0_i32_0 = arith.constant 0 : i32
    return %c0_i32, %arg1 : i32, i32
  }
  func.func @transform_2(%arg0: i32, %arg1: i32) -> (i32, i32) {
    %c0_i32 = arith.constant 0 : i32
    return %arg0, %arg1 : i32, i32
  }
}

</mosaic_0001>

<llo_original>
// kernel: tpu_custom_call.1
$region0: #{tpu_custom_call.1}
  #allocation0 [shape = 'u32[]', space=smem, size = 0x4, offset = 0x4, fixed_abs, tag = 'smem constant byte address 0x4 - core index']
  #allocation1 [shape = 'u32[144,128]{1,0:T(1,128)}', space=vmem, size = 0x12000, scoped, tag = 'internal scratch']
  %s0 = inlined_call_operand.hbm [shape: bf16[8,32], index: 0, kind: input, shape index: {}]
  %s1 = inlined_call_operand.hbm [shape: bf16[32,128], index: 1, kind: input, shape index: {}]
  %s2 = inlined_call_operand.hbm [shape: f32[8,128], index: 2, kind: output, shape index: {}]
  %s3 = sld [smem:[#allocation0]]
  $region26: #{tpu_custom_call.1} parent=0
    _
  %s5 = ssub.s32 1, %s3
  %s6 = scalar_select 0, %s5, %s3
  $region1: #{tpu_custom_call.1} parent=0
    #allocation2 [shape = 'u8[2048]{0}', space=vmem, size = 0x800, scoped, tag = 'input window, operand 0, single buffered']
    #allocation3 [shape = 's32[1]{0}', space=sflag, size = 0x4, scoped, tag = 'scoped memory for tpu_custom_call.1']
    #allocation4 [shape = 's32[1]{0}', space=sflag, size = 0x4, scoped, tag = 'scoped memory for tpu_custom_call.1']
    #allocation5 [shape = 'u8[8192]{0}', space=vmem, size = 0x2000, scoped, tag = 'input window, operand 1, single buffered']
    #allocation6 [shape = 's32[1]{0}', space=sflag, size = 0x4, scoped, tag = 'scoped memory for tpu_custom_call.1']
    #allocation7 [shape = 'u8[4096]{0}', space=vmem, size = 0x1000, scoped, tag = 'output window, operand 0, single buffered']
    %7 = vsyncpa [#allocation3], 0
    %8 = vsyncpa [#allocation6], 0
    %9 = vsyncpa [#allocation4], 0
    // Predicated region
    $region2: #{tpu_custom_call.1} parent=1 // pred_check
      _
    $region3: #{tpu_custom_call.1} parent=1 // pred_check_branch
      %11 = sbr.rel (0) target = $region5
    $region4: #{tpu_custom_call.1} parent=1 // pred_region
      %s13 = ssub.s32 64, 64
      %14 = vsyncadd [#allocation3], %s13
      %s16 = sshll.u32 [#allocation2], 4
      %s17 = int_to_ptr.vmem [resolvable:$true] %s16
      %19 = dma.hbm_to_vmem [thread:$0]  %s0, 64, %s17, [#allocation3]
    $region5: #{tpu_custom_call.1} parent=1 // pred_fallthru
      _
    // Predicated region
    $region6: #{tpu_custom_call.1} parent=1 // pred_check
      _
    $region7: #{tpu_custom_call.1} parent=1 // pred_check_branch
      %21 = sbr.rel (0) target = $region9
    $region8: #{tpu_custom_call.1} parent=1 // pred_region
      %s23 = ssub.s32 256, 256
      %24 = vsyncadd [#allocation6], %s23
      %s25 = sshll.u32 [#allocation5], 4
      %s26 = int_to_ptr.vmem [resolvable:$true] %s25
      %31 = dma.hbm_to_vmem [thread:$0]  %s1, 256, %s26, [#allocation6], 64, 64, 4
    $region9: #{tpu_custom_call.1} parent=1 // pred_fallthru
      _
    // Predicated region
    $region10: #{tpu_custom_call.1} parent=1 // pred_check
      _
    $region11: #{tpu_custom_call.1} parent=1 // pred_check_branch
      %33 = sbr.rel (0) target = $region13
    $region12: #{tpu_custom_call.1} parent=1 // pred_region
      %34 = dma.done [#allocation3], 64
    $region13: #{tpu_custom_call.1} parent=1 // pred_fallthru
      _
    // Predicated region
    $region14: #{tpu_custom_call.1} parent=1 // pred_check
      _
    $region15: #{tpu_custom_call.1} parent=1 // pred_check_branch
      %36 = sbr.rel (0) target = $region17
    $region16: #{tpu_custom_call.1} parent=1 // pred_region
      %37 = dma.done [#allocation6], 256
    $region17: #{tpu_custom_call.1} parent=1 // pred_fallthru
      _
    %v39 = vld [vmem:[#allocation2] sm:$0xf]
    %v40 = vld [vmem:[#allocation5] sm:$0xf]
    %v41 = vld [vmem:[#allocation5 + $0x4] sm:$0xf]
    %v42 = vld [vmem:[#allocation5 + $0x8] sm:$0xf]
    %v43 = vld [vmem:[#allocation5 + $0xc] sm:$0xf]
    %v48 = vunpack.c.l.b16 %v40
    %v49 = vunpack.c.l.b16 %v41
    %v50 = vunpack.c.l.b16 %v42
    %v51 = vunpack.c.l.b16 %v43
    %v52 = vpack.c.b16 %v49, %v48
    %v53 = vpack.c.b16 %v51, %v50
    %vm56 = vcmask 261120
    %v58 = vsel %vm56, %v39, 0
    %60 = vmatprep.subr.bf16.mxu0 0
    %61 = vmatpush1.bf16.msra.mxu0 %v52
    %62 = vmatprep.subr.bf16.mxu0 0
    %63 = vmatpush1.bf16.msra.mxu0 %v53
    %64 = vmatprep.subr.bf16.mxu0 0
    %65 = vmatpush1.bf16.msra.mxu0 0
    %66 = vmatprep.subr.bf16.mxu0 0
    %67 = vmatpush1.bf16.msra.mxu0 0
    %68 = vmatprep.subr.bf16.mxu0 0
    %69 = vmatpush1.bf16.msra.mxu0 0
    %70 = vmatprep.subr.bf16.mxu0 0
    %71 = vmatpush1.bf16.msra.mxu0 0
    %72 = vmatprep.subr.bf16.mxu0 0
    %73 = vmatpush1.bf16.msra.mxu0 0
    %74 = vmatprep.subr.bf16.mxu0 0
    %75 = vmatpush1.bf16.msra.mxu0 0
    %76 = vmatprep.subr.bf16.mxu0 0
    %77 = vmatpush1.bf16.msra.mxu0 0
    %78 = vmatprep.subr.bf16.mxu0 0
    %79 = vmatpush1.bf16.msra.mxu0 0
    %80 = vmatprep.subr.bf16.mxu0 0
    %81 = vmatpush1.bf16.msra.mxu0 0
    %82 = vmatprep.subr.bf16.mxu0 0
    %83 = vmatpush1.bf16.msra.mxu0 0
    %84 = vmatprep.subr.bf16.mxu0 0
    %85 = vmatpush1.bf16.msra.mxu0 0
    %86 = vmatprep.subr.bf16.mxu0 0
    %87 = vmatpush1.bf16.msra.mxu0 0
    %88 = vmatprep.subr.bf16.mxu0 0
    %89 = vmatpush1.bf16.msra.mxu0 0
    %90 = vmatprep.subr.bf16.mxu0 0
    %91 = vmatpush1.bf16.msra.mxu0 0
    %92 = vmatprep.mubr.bf16.mxu0 0
    %93 = vmatmul.mubr.bf16.gmra.mrb[0].mxu0 %v58
    %v94 = vpop.f32.mrb[0].mxu0
    %v95 = vadd.f32 0.0, %v94
    %v96 = vpop.f32.mrb[0].mxu0
    %v97 = vpop.f32.mrb[0].mxu0
    %v98 = vpop.f32.mrb[0].mxu0
    %99 = vdwg.mxu0
    %v100 = vmul.f32 %v95, 0.01
    %v101 = vmax.f32 %v95, %v100
    %v102 = vmul.f32 %v101, 0.5
    %v103 = vtanh.pop %v102
    %v104 = vmul.f32 %v103, 0.5
    %v105 = vadd.f32 %v104, 0.5
    %106 = vst [vmem:[#allocation7] sm:$0xff] %v105
    // Predicated region
    $region18: #{tpu_custom_call.1} parent=1 // pred_check
      _
    $region19: #{tpu_custom_call.1} parent=1 // pred_check_branch
      %108 = sbr.rel (0) target = $region21
    $region20: #{tpu_custom_call.1} parent=1 // pred_region
      %s110 = ssub.s32 128, 128
      %111 = vsyncadd [#allocation4], %s110
      %s113 = sshll.u32 [#allocation7], 4
      %s114 = int_to_ptr.vmem [resolvable:$true] %s113
      %116 = dma.vmem_to_hbm [thread:$0]  %s114, 128, %s2, [#allocation4]
    $region21: #{tpu_custom_call.1} parent=1 // pred_fallthru
      _
    // Predicated region
    $region22: #{tpu_custom_call.1} parent=1 // pred_check
      _
    $region23: #{tpu_custom_call.1} parent=1 // pred_check_branch
      %118 = sbr.rel (0) target = $region25
    $region24: #{tpu_custom_call.1} parent=1 // pred_region
      %119 = dma.done [#allocation4], 128
    $region25: #{tpu_custom_call.1} parent=1 // pred_fallthru
      _
    %120 = vsyncpa [#allocation3], 1
    %121 = vsyncpa [#allocation6], 1
    %122 = vsyncpa [#allocation4], 1

</llo_original>
